<compile_context>
chip_gen: v7x
topology: tpu7x:2x2x1
jax: 0.10.0
libtpu: 0.0.40
codegen_flags: <defaults>
</compile_context>

<pallas_src>
import math

import jax
import jax.numpy as jnp
from jax.experimental import pallas as pl
from jax.experimental.pallas import tpu as pltpu


def _make_concat_kernel(offsets, sizes, n_in):
    """Kernel body: copy each input block into its static channel slice."""

    def kernel(*refs):
        out_ref = refs[n_in]
        for k in range(n_in):
            off, c = offsets[k], sizes[k]
            out_ref[:, off:off + c, :] = refs[k][...].astype(out_ref.dtype)

    return kernel


def concat_pallas(tensors, dim=1):
    """Equivalent of `torch.cat(tensors, dim)` as a Pallas TPU kernel.

    tensors: list of arrays with identical shapes except along `dim`.
    """
    tensors = [jnp.asarray(t) for t in tensors]
    assert len(tensors) >= 1, "need at least one tensor"
    nd = tensors[0].ndim
    d = dim % nd
    ref_shape = tensors[0].shape
    for t in tensors:
        assert t.ndim == nd
        assert t.shape[:d] == ref_shape[:d] and t.shape[d + 1:] == ref_shape[d + 1:], \
            "all tensors must match outside the concat dimension"

    out_dtype = jnp.result_type(*[t.dtype for t in tensors])
    sizes = tuple(int(t.shape[d]) for t in tensors)
    offsets = tuple(int(sum(sizes[:k])) for k in range(len(sizes)))
    c_total = int(sum(sizes))
    n_in = len(tensors)

    # Free reshapes: (prefix, C_k, suffix) with the concat axis in the middle
    # and the (lane-dense) suffix last.
    P = int(math.prod(ref_shape[:d]))
    S = int(math.prod(ref_shape[d + 1:]))
    x3 = [t.reshape(P, s, S) for t, s in zip(tensors, sizes)]

    # ---------------- tile selection (VMEM-budgeted, lane-dense) ----------------
    out_itemsize = jnp.dtype(out_dtype).itemsize
    in_bytes_per_s = sum(jnp.dtype(t.dtype).itemsize * s for t, s in zip(tensors, sizes))
    # Bytes held in VMEM per unit of suffix per unit of prefix, double-buffered
    # (inputs + output).
    bytes_per_unit = 2 * (in_bytes_per_s + c_total * out_itemsize)
    budget = 8 * 1024 * 1024  # total pipeline footprint; fits v5e/v6e/v7x scoped VMEM

    # Suffix (lane) tile: multiple of 128 for unmasked stores, or the full dim.
    if S <= 128:
        t_s = S
    else:
        max_s = max(128, (budget // max(1, bytes_per_unit)) // 128 * 128)
        if S % 128 == 0:
            t_s = min(S, max_s)
        else:
            t_s = min((S // 128) * 128, max_s)

    # Prefix tile: aggregate rows only when one block already spans all of S,
    # but keep >= 2 balanced blocks so both v7x TensorCores get work.
    t_p = 1
    if t_s == S and P > 1:
        per_p = bytes_per_unit * S
        t_p = max(1, min(P, budget // max(1, per_p)))
        if t_p >= P and P >= 2:
            t_p = pl.cdiv(P, 2)

    grid = (pl.cdiv(P, t_p), pl.cdiv(S, t_s))

    in_specs = [
        pl.BlockSpec((t_p, s, t_s), lambda p, j: (p, 0, j)) for s in sizes
    ]
    out_spec = pl.BlockSpec((t_p, c_total, t_s), lambda p, j: (p, 0, j))

    out3 = pl.pallas_call(
        _make_concat_kernel(offsets, sizes, n_in),
        out_shape=jax.ShapeDtypeStruct((P, c_total, S), out_dtype),
        grid_spec=pltpu.PrefetchScalarGridSpec(
            num_scalar_prefetch=0,
            grid=grid,
            in_specs=in_specs,
            out_specs=out_spec,
        ),
        compiler_params=pltpu.CompilerParams(
            dimension_semantics=("parallel", "parallel"),
        ),
    )(*x3)

    return out3.reshape(ref_shape[:d] + (c_total,) + ref_shape[d + 1:])


if __name__ == "__main__":
    key = jax.random.PRNGKey(0)
    k1, k2, k3 = jax.random.split(key, 3)

    # YOLO-style usage: concat NCHW feature maps along the channel dim (dim=1).
    B, H, W = 2, 16, 16
    x1 = jax.random.normal(k1, (B, 4, H, W), dtype=jnp.float32)
    x2 = jax.random.normal(k2, (B, 8, H, W), dtype=jnp.float32)

    out = concat_pallas([x1, x2], dim=1)
    out = jax.block_until_ready(out)

    ref = jnp.concatenate([x1, x2], axis=1)
    assert out.shape == (B, 12, H, W), out.shape
    assert jnp.array_equal(out, ref), float(jnp.max(jnp.abs(out - ref)))

    # Second check: three inputs, different channel counts.
    x3 = jax.random.normal(k3, (B, 4, H, W), dtype=jnp.float32)
    out2 = jax.block_until_ready(concat_pallas([x1, x2, x3], dim=1))
    ref2 = jnp.concatenate([x1, x2, x3], axis=1)
    assert out2.shape == (B, 16, H, W), out2.shape
    assert jnp.array_equal(out2, ref2), float(jnp.max(jnp.abs(out2 - ref2)))

    print("KERNEL_OK")
</pallas_src>

<mosaic_0001>
module attributes {stable_mosaic.version = 11 : i64} {
  func.func @kernel(%arg0: i32, %arg1: i32, %arg2: memref<1x4x256xf32, #tpu.memory_space<vmem>>, %arg3: memref<1x8x256xf32, #tpu.memory_space<vmem>>, %arg4: memref<1x12x256xf32, #tpu.memory_space<vmem>>) attributes {dimension_semantics = [#tpu.dimension_semantics<parallel>, #tpu.dimension_semantics<parallel>], iteration_bounds = array<i64: 2, 1>, scalar_prefetch = 0 : i64, scratch_operands = 0 : i64, tpu.core_type = #tpu.core_type<tc>, window_params = [{transform_indices = @transform_0, window_bounds = array<i64: 1, 4, 256>}, {transform_indices = @transform_1, window_bounds = array<i64: 1, 8, 256>}, {transform_indices = @transform_2, window_bounds = array<i64: 1, 12, 256>}]} {
    %c0 = arith.constant 0 : index
    %c0_0 = arith.constant 0 : index
    %c0_1 = arith.constant 0 : index
    %0 = vector.load %arg2[%c0, %c0_0, %c0_1] : memref<1x4x256xf32, #tpu.memory_space<vmem>>, vector<1x4x256xf32>
    %c0_2 = arith.constant 0 : index
    %c0_3 = arith.constant 0 : index
    %c0_4 = arith.constant 0 : index
    %1 = vector.load %arg4[%c0_2, %c0_3, %c0_4] : memref<1x12x256xf32, #tpu.memory_space<vmem>>, vector<1x4x256xf32>
    tpu.vector_store %arg4[%c0_2, %c0_3, %c0_4], %0 {strides = array<i32>} : memref<1x12x256xf32, #tpu.memory_space<vmem>>, vector<1x4x256xf32>,
    %c0_5 = arith.constant 0 : index
    %c0_6 = arith.constant 0 : index
    %c0_7 = arith.constant 0 : index
    %2 = vector.load %arg3[%c0_5, %c0_6, %c0_7] : memref<1x8x256xf32, #tpu.memory_space<vmem>>, vector<1x8x256xf32>
    %c0_8 = arith.constant 0 : index
    %c4 = arith.constant 4 : index
    %c0_9 = arith.constant 0 : index
    %3 = vector.load %arg4[%c0_8, %c4, %c0_9] : memref<1x12x256xf32, #tpu.memory_space<vmem>>, vector<1x8x256xf32>
    tpu.vector_store %arg4[%c0_8, %c4, %c0_9], %2 {strides = array<i32>} : memref<1x12x256xf32, #tpu.memory_space<vmem>>, vector<1x8x256xf32>,
    return
  }
  func.func @transform_0(%arg0: i32, %arg1: i32) -> (i32, i32, i32) {
    %c0_i32 = arith.constant 0 : i32
    %c0_i32_0 = arith.constant 0 : i32
    return %arg0, %c0_i32, %arg1 : i32, i32, i32
  }
  func.func @transform_1(%arg0: i32, %arg1: i32) -> (i32, i32, i32) {
    %c0_i32 = arith.constant 0 : i32
    %c0_i32_0 = arith.constant 0 : i32
    return %arg0, %c0_i32, %arg1 : i32, i32, i32
  }
  func.func @transform_2(%arg0: i32, %arg1: i32) -> (i32, i32, i32) {
    %c0_i32 = arith.constant 0 : i32
    %c0_i32_0 = arith.constant 0 : i32
    return %arg0, %c0_i32, %arg1 : i32, i32, i32
  }
}

</mosaic_0001>

<llo_original>
// kernel: tpu_custom_call.1
$region0: #{tpu_custom_call.1}
  #allocation0 [shape = 'u32[]', space=smem, size = 0x4, offset = 0x4, fixed_abs, tag = 'smem constant byte address 0x4 - core index']
  #allocation1 [shape = 'u32[144,128]{1,0:T(1,128)}', space=vmem, size = 0x12000, scoped, tag = 'internal scratch']
  %s0 = inlined_call_operand.hbm [shape: f32[2,4,256], index: 0, kind: input, shape index: {}]
  %s1 = inlined_call_operand.hbm [shape: f32[2,8,256], index: 1, kind: input, shape index: {}]
  %s2 = inlined_call_operand.vmem [shape: f32[2,12,256], index: 2, kind: output, shape index: {}]
  %s3 = sld [smem:[#allocation0]]
  $region49: #{tpu_custom_call.1} parent=0
    _
  %s5 = ssub.s32 1, %s3
  %s6 = scalar_select 0, %s5, %s3
  $region1: #{tpu_custom_call.1} parent=0
    #allocation2 [shape = 'u8[8192]{0}', space=vmem, size = 0x2000, scoped, tag = 'input window, operand 0']
    #allocation3 [shape = 's32[2]{0}', space=sflag, size = 0x8, scoped, tag = 'scoped memory for tpu_custom_call.1']
    #allocation4 [shape = 'u8[16384]{0}', space=vmem, size = 0x4000, scoped, tag = 'input window, operand 1']
    #allocation5 [shape = 's32[2]{0}', space=sflag, size = 0x8, scoped, tag = 'scoped memory for tpu_custom_call.1']
    %7 = vsyncpa [#allocation3], 0
    %s8 = scalar_lea.sflag [#allocation3], 1
    %9 = vsyncpa %s8, 0
    %10 = vsyncpa [#allocation5], 0
    %s11 = scalar_lea.sflag [#allocation5], 1
    %12 = vsyncpa %s11, 0
    loop: start=0, step=1, limit=4
    $region2: #{tpu_custom_call.1} parent=1 // loop_pre_header
      _
    $region3: #{tpu_custom_call.1} parent=1 // loop_header
      %s14 = sphi 0, %s18
      %p15 = scmp.ge.s32.totalorder %s14, 4
      %s21 = sphi 0, %s33
      %s22 = sphi 0, %s29
      %s23 = sphi 0, %s21
      %s24 = sphi 0, %s22
      %s25 = sphi 0, %s23
      %s26 = sphi 0, %s24
      %s38 = sphi 0, %s40
      %s41 = sphi 0, %s38
      %s42 = sphi 0, %s41
      %s58 = sphi 0, %s42
      %s66 = sphi 0, %s68
      %s69 = sphi 0, %s66
      %s70 = sphi 0, %s69
      %s86 = sphi 0, %s70
      %s94 = sphi 0, %s96
      %s97 = sphi 0, %s94
      %s98 = sphi 0, %s97
      %s114 = sphi 0, %s98
    $region4: #{tpu_custom_call.1} parent=1 // loop_header_branch
      %17 = sbr.rel (%p15) target = $region8
    $region5: #{tpu_custom_call.1} parent=1 // loop_body
      %s19 = ssub.s32 %s14, 1
      %s20 = ssub.s32 %s14, 2
      %s27 = sadd.s32 1, %s22
      %p28 = scmp.ge.s32.totalorder %s27, 1
      %s29 = scalar_select %p28, 0, %s27
      %s30 = sadd.s32 1, %s21
      %s31 = scalar_select %p28, %s30, %s21
      %p32 = scmp.ge.s32.totalorder %s31, 2
      %s33 = scalar_select %p32, 0, %s31
      %s34 = ssub.s32 %s21, %s33
      %s35 = ssub.s32 %s22, %s29
      %s36 = sor.u32 %s34, %s35
      %p37 = scmp.eq.s32.totalorder %s36, 0
      %s39 = sadd.s32 %s38, 1
      %s40 = scalar_select %p37, %s38, %s39
      %p43 = pneg %p37
      %p44 = scmp.eq.s32.totalorder %s14, 1
      %p45 = por %p43, %p44
      %p46 = scmp.ne.s32.totalorder %s38, %s41
      %p47 = scmp.eq.s32.totalorder %s14, 0
      %p48 = por %p46, %p47
      %p49 = scmp.ne.s32.totalorder %s38, %s41
      %p50 = scmp.eq.s32.totalorder %s19, 1
      %p51 = por %p49, %p50
      %p52 = scmp.ne.s32.totalorder %s41, %s42
      %p53 = scmp.eq.s32.totalorder %s19, 0
      %p54 = por %p52, %p53
      %p55 = scmp.ne.s32.totalorder %s41, %s42
      %p56 = scmp.eq.s32.totalorder %s20, 1
      %p57 = por %p55, %p56
      %p59 = scmp.ne.s32.totalorder %s42, %s58
      %p60 = scmp.eq.s32.totalorder %s20, 0
      %p61 = por %p59, %p60
      %s62 = ssub.s32 %s21, %s33
      %s63 = ssub.s32 %s22, %s29
      %s64 = sor.u32 %s62, %s63
      %p65 = scmp.eq.s32.totalorder %s64, 0
      %s67 = sadd.s32 %s66, 1
      %s68 = scalar_select %p65, %s66, %s67
      %p71 = pneg %p65
      %p72 = scmp.eq.s32.totalorder %s14, 1
      %p73 = por %p71, %p72
      %p74 = scmp.ne.s32.totalorder %s66, %s69
      %p75 = scmp.eq.s32.totalorder %s14, 0
      %p76 = por %p74, %p75
      %p77 = scmp.ne.s32.totalorder %s66, %s69
      %p78 = scmp.eq.s32.totalorder %s19, 1
      %p79 = por %p77, %p78
      %p80 = scmp.ne.s32.totalorder %s69, %s70
      %p81 = scmp.eq.s32.totalorder %s19, 0
      %p82 = por %p80, %p81
      %p83 = scmp.ne.s32.totalorder %s69, %s70
      %p84 = scmp.eq.s32.totalorder %s20, 1
      %p85 = por %p83, %p84
      %p87 = scmp.ne.s32.totalorder %s70, %s86
      %p88 = scmp.eq.s32.totalorder %s20, 0
      %p89 = por %p87, %p88
      %s90 = ssub.s32 %s21, %s33
      %s91 = ssub.s32 %s22, %s29
      %s92 = sor.u32 %s90, %s91
      %p93 = scmp.eq.s32.totalorder %s92, 0
      %s95 = sadd.s32 %s94, 1
      %s96 = scalar_select %p93, %s94, %s95
      %p99 = pneg %p93
      %p100 = scmp.eq.s32.totalorder %s14, 1
      %p101 = por %p99, %p100
      %p102 = scmp.ne.s32.totalorder %s94, %s97
      %p103 = scmp.eq.s32.totalorder %s14, 0
      %p104 = por %p102, %p103
      %p105 = scmp.ne.s32.totalorder %s94, %s97
      %p106 = scmp.eq.s32.totalorder %s19, 1
      %p107 = por %p105, %p106
      %p108 = scmp.ne.s32.totalorder %s97, %s98
      %p109 = scmp.eq.s32.totalorder %s19, 0
      %p110 = por %p108, %p109
      %p111 = scmp.ne.s32.totalorder %s97, %s98
      %p112 = scmp.eq.s32.totalorder %s20, 1
      %p113 = por %p111, %p112
      %p115 = scmp.ne.s32.totalorder %s98, %s114
      %p116 = scmp.eq.s32.totalorder %s20, 0
      %p117 = por %p115, %p116
      %p118 = scmp.le.s32.totalorder 1, %s14
      %p119 = scmp.lt.s32.totalorder %s14, 3
      %p120 = pnand %p118, %p119
      %p121 = pneg %p120
      // Predicated region
      $region9: #{tpu_custom_call.1} parent=5 // pred_check
        _
      $region10: #{tpu_custom_call.1} parent=5 // pred_check_branch
        %123 = sbr.rel (%p120) target = $region12
      $region11: #{tpu_custom_call.1} parent=5 // pred_region
        %s124 = ssub.s32 %s14, 1
      $region12: #{tpu_custom_call.1} parent=5 // pred_fallthru
        _
      %p125 = scmp.lt.s32.totalorder %s14, 2
      // Predicated region
      $region13: #{tpu_custom_call.1} parent=5 // pred_check
        %p126 = pneg %p125
      $region14: #{tpu_custom_call.1} parent=5 // pred_check_branch
        %128 = sbr.rel (%p126) target = $region16
      $region15: #{tpu_custom_call.1} parent=5 // pred_region
        // Predicated region
        $region17: #{tpu_custom_call.1} parent=15 // pred_check
          %p129 = pneg %p48
        $region18: #{tpu_custom_call.1} parent=15 // pred_check_branch
          %131 = sbr.rel (%p129) target = $region20
        $region19: #{tpu_custom_call.1} parent=15 // pred_region
          %s132 = sand.u32 %s38, 1
          %s133 = scalar_lea.sflag [#allocation3], %s132
          %s134 = sand.u32 %s38, 1
          %s135 = smul.addr %s134, 8
          %s136 = scalar_lea.vmem [#allocation2], %s135
          %s137 = smul.u32 2, %s22
          %s139 = ssub.s32 128, 128
          %140 = vsyncadd %s133, %s139
          %s141 = smul.addr %s21, 2
          %s142 = sadd.s32 %s137, %s141
          %s143 = smul.addr %s142, 64
          %s144 = scalar_lea.hbm %s0, %s143
          %s146 = sshll.u32 %s136, 4
          %s147 = int_to_ptr.vmem [resolvable:$true] %s146
          %149 = dma.hbm_to_vmem [thread:$0]  %s144, 128, %s147, %s133
        $region20: #{tpu_custom_call.1} parent=15 // pred_fallthru
          _
        // Predicated region
        $region21: #{tpu_custom_call.1} parent=15 // pred_check
          %p150 = pneg %p76
        $region22: #{tpu_custom_call.1} parent=15 // pred_check_branch
          %152 = sbr.rel (%p150) target = $region24
        $region23: #{tpu_custom_call.1} parent=15 // pred_region
          %s153 = sand.u32 %s66, 1
          %s154 = scalar_lea.sflag [#allocation5], %s153
          %s155 = sand.u32 %s66, 1
          %s156 = smul.addr %s155, 16
          %s157 = scalar_lea.vmem [#allocation4], %s156
          %s158 = smul.u32 2, %s22
          %s160 = ssub.s32 256, 256
          %161 = vsyncadd %s154, %s160
          %s162 = smul.addr %s21, 2
          %s163 = sadd.s32 %s158, %s162
          %s164 = smul.addr %s163, 128
          %s165 = scalar_lea.hbm %s1, %s164
          %s167 = sshll.u32 %s157, 4
          %s168 = int_to_ptr.vmem [resolvable:$true] %s167
          %170 = dma.hbm_to_vmem [thread:$0]  %s165, 256, %s168, %s154
        $region24: #{tpu_custom_call.1} parent=15 // pred_fallthru
          _
      $region16: #{tpu_custom_call.1} parent=5 // pred_fallthru
        _
      %p171 = scmp.le.s32.totalorder 1, %s14
      %p172 = scmp.lt.s32.totalorder %s14, 3
      %p173 = pnand %p171, %p172
      %p174 = pneg %p173
      // Predicated region
      $region25: #{tpu_custom_call.1} parent=5 // pred_check
        _
      $region26: #{tpu_custom_call.1} parent=5 // pred_check_branch
        %176 = sbr.rel (%p173) target = $region28
      $region27: #{tpu_custom_call.1} parent=5 // pred_region
        %s177 = ssub.s32 %s14, 1
        %s178 = sand.u32 %s41, 1
        %s179 = scalar_lea.sflag [#allocation3], %s178
        %s180 = sand.u32 %s41, 1
        %s181 = smul.addr %s180, 8
        %s182 = scalar_lea.vmem [#allocation2], %s181
        // Predicated region
        $region29: #{tpu_custom_call.1} parent=27 // pred_check
          %p183 = pneg %p54
        $region30: #{tpu_custom_call.1} parent=27 // pred_check_branch
          %185 = sbr.rel (%p183) target = $region32
        $region31: #{tpu_custom_call.1} parent=27 // pred_region
          %186 = dma.done %s179, 128
        $region32: #{tpu_custom_call.1} parent=27 // pred_fallthru
          _
        %s187 = sand.u32 %s69, 1
        %s188 = scalar_lea.sflag [#allocation5], %s187
        %s189 = sand.u32 %s69, 1
        %s190 = smul.addr %s189, 16
        %s191 = scalar_lea.vmem [#allocation4], %s190
        // Predicated region
        $region33: #{tpu_custom_call.1} parent=27 // pred_check
          %p192 = pneg %p82
        $region34: #{tpu_custom_call.1} parent=27 // pred_check_branch
          %194 = sbr.rel (%p192) target = $region36
        $region35: #{tpu_custom_call.1} parent=27 // pred_region
          %195 = dma.done %s188, 256
        $region36: #{tpu_custom_call.1} parent=27 // pred_fallthru
          _
        %s196 = sand.u32 %s41, 1
        %s197 = scalar_lea.sflag [#allocation3], %s196
        %s198 = sand.u32 %s41, 1
        %s199 = smul.addr %s198, 8
        %s200 = scalar_lea.vmem [#allocation2], %s199
        %p201 = pneg %p54
        %p202 = pneg %p51
        %s203 = sand.u32 %s69, 1
        %s204 = scalar_lea.sflag [#allocation5], %s203
        %s205 = sand.u32 %s69, 1
        %s206 = smul.addr %s205, 16
        %s207 = scalar_lea.vmem [#allocation4], %s206
        %p208 = pneg %p82
        %p209 = pneg %p79
        %p210 = pneg %p110
        %p211 = pneg %p107
        %s212 = smul.u32 2, %s24
        %p213 = scmp.lt.s32.totalorder %s23, 1
        %s214 = scalar_select %p213, %s23, 1
        %p215 = scmp.lt.s32.totalorder %s212, 1
        %s216 = scalar_select %p215, %s212, 1
        %s217 = smul.addr %s214, 4
        %s218 = sadd.s32 %s216, %s217
        %s219 = smul.addr %s218, 8
        %s220 = scalar_lea.vmem %s2, %s219
        %s221 = smul.u32 2, %s24
        %s222 = smul.u32 2, %s24
        %s223 = smul.u32 2, %s24
        %p224 = scmp.lt.s32.totalorder %s23, 1
        %s225 = scalar_select %p224, %s23, 1
        %p226 = scmp.lt.s32.totalorder %s223, 1
        %s227 = scalar_select %p226, %s223, 1
        %s228 = smul.addr %s225, 4
        %s229 = sadd.s32 %s227, %s228
        %s230 = smul.addr %s229, 8
        %s231 = scalar_lea.vmem %s2, %s230
        %s232 = smul.u32 2, %s24
        %v233 = vld [vmem:[%s182] sm:$0xff]
        %v235 = vcombine.high %v233, %v233
        %237 = vst [vmem:[%s231] sm:$0xf] %v233
        %238 = vst [vmem:[%s231 + $0x8] sm:$0xf] %v235
        %v239 = vld [vmem:[%s191] sm:$0xff]
        %v240 = vld [vmem:[%s191 + $0x8] sm:$0xff]
        %v243 = vrot.slane %v239, 4
        %v244 = vrot.slane %v240, 4
        %247 = vst [vmem:[%s231] sm:$0xf0] %v243
        %248 = vst [vmem:[%s231 + $0x8] sm:$0xf0] %v244
        %249 = vst [vmem:[%s231 + $0x10] sm:$0xf] %v243
        %250 = vst [vmem:[%s231 + $0x18] sm:$0xf] %v244
        %s251 = smul.u32 2, %s24
        %p252 = scmp.lt.s32.totalorder %s23, 1
        %s253 = scalar_select %p252, %s23, 1
        %p254 = scmp.lt.s32.totalorder %s251, 1
        %s255 = scalar_select %p254, %s251, 1
        %s256 = smul.addr %s253, 4
        %s257 = sadd.s32 %s255, %s256
        %s258 = smul.addr %s257, 8
        %s259 = scalar_lea.vmem %s2, %s258
        // Predicated region
        $region37: #{tpu_custom_call.1} parent=27 // pred_check
          %p260 = pneg %p107
        $region38: #{tpu_custom_call.1} parent=27 // pred_check_branch
          %262 = sbr.rel (%p260) target = $region40
        $region39: #{tpu_custom_call.1} parent=27 // pred_region
          %s263 = smul.u32 2, %s24
        $region40: #{tpu_custom_call.1} parent=27 // pred_fallthru
          _
      $region28: #{tpu_custom_call.1} parent=5 // pred_fallthru
        _
      %p264 = scmp.le.s32.totalorder 2, %s14
      // Predicated region
      $region41: #{tpu_custom_call.1} parent=5 // pred_check
        %p265 = pneg %p264
      $region42: #{tpu_custom_call.1} parent=5 // pred_check_branch
        %267 = sbr.rel (%p265) target = $region44
      $region43: #{tpu_custom_call.1} parent=5 // pred_region
        %s268 = ssub.s32 %s14, 2
        // Predicated region
        $region45: #{tpu_custom_call.1} parent=43 // pred_check
          %p269 = pneg %p113
        $region46: #{tpu_custom_call.1} parent=43 // pred_check_branch
          %271 = sbr.rel (%p269) target = $region48
        $region47: #{tpu_custom_call.1} parent=43 // pred_region
          %s272 = smul.u32 2, %s26
          %p273 = scmp.lt.s32.totalorder %s25, 1
          %s274 = scalar_select %p273, %s25, 1
          %p275 = scmp.lt.s32.totalorder %s272, 1
          %s276 = scalar_select %p275, %s272, 1
          %s277 = smul.addr %s274, 4
          %s278 = sadd.s32 %s276, %s277
          %s279 = smul.addr %s278, 8
          %s280 = scalar_lea.vmem %s2, %s279
        $region48: #{tpu_custom_call.1} parent=43 // pred_fallthru
          _
      $region44: #{tpu_custom_call.1} parent=5 // pred_fallthru
        _
    $region6: #{tpu_custom_call.1} parent=1 // loop_footer
      %s18 = sadd.s32 1, %s14
    $region7: #{tpu_custom_call.1} parent=1 // loop_footer_branch
      %13 = sbr.rel target = $region3
    $region8: #{tpu_custom_call.1} parent=1 // loop_exit
      _
    %281 = vsyncpa [#allocation3], 1
    %s282 = scalar_lea.sflag [#allocation3], 1
    %283 = vsyncpa %s282, 1
    %284 = vsyncpa [#allocation5], 1
    %s285 = scalar_lea.sflag [#allocation5], 1
    %286 = vsyncpa %s285, 1

</llo_original>
